<compile_context>
chip_gen: v5e
topology: v5e:2x2
jax: 0.10.0
libtpu: 0.0.40
codegen_flags: <defaults>
</compile_context>

<pallas_src>
import functools

import jax
import jax.numpy as jnp
from jax.experimental import pallas as pl
from jax.experimental.pallas import tpu as pltpu

# ----------------------------- config (small, consistent with the module) ----
VOCAB_SIZE = 32
EMBED_DIM = 32
DATA_SIZE = 16          # total dialogs
BATCH_SIZE = 8          # rows per batch (multiple of 8 -> tile-aligned slicing)
DIA_MAX_LEN = 16
ANS_MAX_LEN = 8
N_SAMPLES = 4
PAD_TOK = 0             # self.special_tokens[self.pad_tok]
NUM_BATCHES = DATA_SIZE // BATCH_SIZE

VPAD = 128              # vocab padded to MXU-native K
EPAD = 128              # embed padded to full lane width (lane-dense stores)

SRC_ROWS = BATCH_SIZE * DIA_MAX_LEN                  # 128
N_ROWS = BATCH_SIZE * (DIA_MAX_LEN + ANS_MAX_LEN)    # 192


# ----------------------------- init-time helper (hoisted out of hot path) ----
def pad_embedding_table(emb_table):
    """Zero-pad (V, E) -> (128, 128) ONCE at init (not per training step)."""
    v, e = emb_table.shape
    assert v <= VPAD and e <= EPAD, "vocab/embed must fit a 128x128 MXU tile"
    return jnp.zeros((VPAD, EPAD), jnp.float32).at[:v, :e].set(emb_table)


# ----------------------------- fused kernel ----------------------------------
def _fused_trainer_kernel(bidx_ref,            # (NB,) int32 scalar prefetch (SMEM)
                          src_ref, tgt_ref,    # (B, DIA), (B, ANS) int32 windows
                          gen_ref,             # (B, ANS) int32 generated sentences
                          avp_ref,             # (2, N_SAMPLES, B) f32 [av; probs]
                          tab_ref,             # (VPAD, EPAD) f32 padded table
                          mask_ref,            # (B, 128) int32: src|tgt masks
                          emb_ref,             # (N_ROWS, EPAD) f32 lane-dense slab
                          scal_ref,            # (8, 128) f32: [nsv, acc, 0, ...]
                          *, pad):
    del bidx_ref                               # consumed by the index_maps only
    b, dia = src_ref.shape
    ans = tgt_ref.shape[1]
    vpad = tab_ref.shape[0]

    src = src_ref[...]                         # (B, DIA) int32
    tgt = tgt_ref[...]                         # (B, ANS) int32

    # ---- get_batch(): pad masks, merged into ONE lane-dense (B,128) block ---
    # single output array -> single writeback DMA descriptor per grid step.
    src_m = (src == pad).astype(jnp.int32)
    tgt_m = (tgt == pad).astype(jnp.int32)
    mask_ref[...] = jnp.zeros((b, 128), jnp.int32)
    mask_ref[:, :dia] = src_m
    mask_ref[:, dia:dia + ans] = tgt_m

    # ---- nn.Embedding lookup: two one-hot matmuls stored in place -----------
    # (shared lane-iota; two half-size dots keep peak vreg/VMEM pressure low)
    iota_v = jax.lax.broadcasted_iota(jnp.int32, (b, dia, vpad), 2)
    oh_src = (src[:, :, None] == iota_v).astype(jnp.float32).reshape(b * dia, vpad)
    oh_tgt = (tgt[:, :, None] == iota_v[:, :ans, :]).astype(
        jnp.float32).reshape(b * ans, vpad)
    tab = tab_ref[...]
    emb_ref[:b * dia, :] = jnp.dot(oh_src, tab,
                                   preferred_element_type=jnp.float32)
    emb_ref[b * dia:, :] = jnp.dot(oh_tgt, tab,
                                   preferred_element_type=jnp.float32)

    # ---- neg_state_value = -mean(action_values * probs) ---------------------
    avp = avp_ref[...]                         # (2, N_SAMPLES, B)
    prod = avp[0] * avp[1]
    nsv = -jnp.sum(prod) / jnp.float32(prod.size)

    # ---- get_accuracy(gen_sents, tgt) ----------------------------------------
    is_target = tgt != pad
    hit = jnp.logical_and(gen_ref[...] == tgt, is_target)
    hit_sum = jnp.sum(hit.astype(jnp.float32))
    tgt_sum = jnp.sum(is_target.astype(jnp.float32))
    acc = hit_sum / jnp.maximum(tgt_sum, 1.0)   # all-pad target -> 0, not NaN

    # ---- pack the two scalars into one lane-dense block ----------------------
    lane = jax.lax.broadcasted_iota(jnp.int32, (8, 128), 1)
    scal_ref[...] = (jnp.where(lane == 0, nsv, 0.0)
                     + jnp.where(lane == 1, acc, 0.0))


# ----------------------------- "Trainer" step glue (jitted) -------------------
@jax.jit
def trainer_step(batch_indices, dialog, answer, emb_table_padded,
                 gen_sents, av_probs):
    """Tensor math of Trainer.forward() for several batch indices in ONE launch.

    batch_indices: (NB,) int32 block indices (row offset = idx * BATCH_SIZE).
    gen_sents:     (NB, B, ANS) int32 per-batch generated sentences.
    av_probs:      (NB, 2, N_SAMPLES, B) f32 stacked [action_values; probs].
    """
    b, dia, ans = BATCH_SIZE, DIA_MAX_LEN, ANS_MAX_LEN
    e = EMBED_DIM
    nb = batch_indices.shape[0]

    grid_spec = pltpu.PrefetchScalarGridSpec(
        num_scalar_prefetch=1,
        grid=(nb,),
        in_specs=[
            # batch window selected by the prefetched batch index (block index
            # -> element offset bidx*BATCH_SIZE, matching get_batch()).
            pl.BlockSpec((b, dia), lambda i, bi: (bi[i], 0)),          # dialog
            pl.BlockSpec((b, ans), lambda i, bi: (bi[i], 0)),          # answer
            pl.BlockSpec((None, b, ans), lambda i, bi: (i, 0, 0)),     # gen_sents
            pl.BlockSpec((None, 2, N_SAMPLES, b),
                         lambda i, bi: (i, 0, 0, 0)),                  # av/probs
            pl.BlockSpec((VPAD, EPAD), lambda i, bi: (0, 0)),          # table
        ],
        out_specs=[
            pl.BlockSpec((None, b, 128), lambda i, bi: (i, 0, 0)),     # masks
            pl.BlockSpec((None, N_ROWS, EPAD), lambda i, bi: (i, 0, 0)),  # emb
            pl.BlockSpec((None, 8, 128), lambda i, bi: (i, 0, 0)),     # scalars
        ],
    )

    out_shapes = (
        jax.ShapeDtypeStruct((nb, b, 128), jnp.int32),
        jax.ShapeDtypeStruct((nb, N_ROWS, EPAD), jnp.float32),
        jax.ShapeDtypeStruct((nb, 8, 128), jnp.float32),
    )

    mask_slab, emb_slab, scal = pl.pallas_call(
        functools.partial(_fused_trainer_kernel, pad=PAD_TOK),
        grid_spec=grid_spec,
        out_shape=out_shapes,
        compiler_params=pltpu.CompilerParams(
            # independent per-batch grid points -> both TensorCores on v7x
            dimension_semantics=("parallel",)),
    )(batch_indices, dialog, answer, gen_sents, av_probs, emb_table_padded)

    # unpack (all fused under jit: no eager dispatches)
    src_mask = mask_slab[:, :, :dia]
    tgt_mask = mask_slab[:, :, dia:dia + ans]
    emb = emb_slab[:, :, :e]
    src_emb = emb[:, :b * dia, :].reshape(nb, b, dia, e)
    tgt_emb = emb[:, b * dia:, :].reshape(nb, b, ans, e)
    nsv = scal[:, 0, 0]
    g_acc = scal[:, 0, 1]
    return src_mask, tgt_mask, src_emb, tgt_emb, nsv, g_acc


if __name__ == "__main__":
    key = jax.random.PRNGKey(0)
    k_emb, k_dia, k_ans, k_gen, k_avp = jax.random.split(key, 5)

    # deterministic "xavier-ish" embedding table; padding_idx row zeroed
    emb_table = (jax.random.normal(k_emb, (VOCAB_SIZE, EMBED_DIM),
                                   dtype=jnp.float32) * 0.05)
    emb_table = emb_table.at[PAD_TOK, :].set(0.0)
    emb_padded = pad_embedding_table(emb_table)     # hoisted: once at init

    dialog = jax.random.randint(k_dia, (DATA_SIZE, DIA_MAX_LEN), 0, VOCAB_SIZE,
                                dtype=jnp.int32)
    answer = jax.random.randint(k_ans, (DATA_SIZE, ANS_MAX_LEN), 0, VOCAB_SIZE,
                                dtype=jnp.int32)
    # synthetic per-batch generator outputs / rollout stats (see TODO above)
    gen_sents = jax.random.randint(k_gen, (NUM_BATCHES, BATCH_SIZE, ANS_MAX_LEN),
                                   0, VOCAB_SIZE, dtype=jnp.int32)
    av_probs = jax.random.uniform(
        k_avp, (NUM_BATCHES, 2, N_SAMPLES, BATCH_SIZE), dtype=jnp.float32)

    batch_indices = jnp.arange(NUM_BATCHES, dtype=jnp.int32)

    outs = trainer_step(batch_indices, dialog, answer, emb_padded,
                        gen_sents, av_probs)
    outs = jax.block_until_ready(outs)
    src_mask, tgt_mask, src_emb, tgt_emb, nsv, g_acc = outs

    assert src_mask.shape == (NUM_BATCHES, BATCH_SIZE, DIA_MAX_LEN)
    assert tgt_mask.shape == (NUM_BATCHES, BATCH_SIZE, ANS_MAX_LEN)
    assert src_emb.shape == (NUM_BATCHES, BATCH_SIZE, DIA_MAX_LEN, EMBED_DIM)
    assert tgt_emb.shape == (NUM_BATCHES, BATCH_SIZE, ANS_MAX_LEN, EMBED_DIM)
    assert nsv.shape == (NUM_BATCHES,) and g_acc.shape == (NUM_BATCHES,)

    ok = True
    for bi in range(NUM_BATCHES):
        start = bi * BATCH_SIZE
        src_ref = dialog[start:start + BATCH_SIZE]
        tgt_ref = answer[start:start + BATCH_SIZE]

        ok &= bool(jnp.array_equal(src_mask[bi],
                                   (src_ref == PAD_TOK).astype(jnp.int32)))
        ok &= bool(jnp.array_equal(tgt_mask[bi],
                                   (tgt_ref == PAD_TOK).astype(jnp.int32)))
        ok &= bool(jnp.allclose(src_emb[bi], emb_table[src_ref], atol=1e-5))
        ok &= bool(jnp.allclose(tgt_emb[bi], emb_table[tgt_ref], atol=1e-5))

        av, p = av_probs[bi, 0], av_probs[bi, 1]
        nsv_ref = -jnp.mean(av * p)
        is_t = tgt_ref != PAD_TOK
        acc_ref = (jnp.sum(((gen_sents[bi] == tgt_ref) & is_t)
                           .astype(jnp.float32))
                   / jnp.maximum(jnp.sum(is_t.astype(jnp.float32)), 1.0))
        ok &= bool(jnp.allclose(nsv[bi], nsv_ref, atol=1e-5))
        ok &= bool(jnp.allclose(g_acc[bi], acc_ref, atol=1e-5))

    assert ok
    print("KERNEL_OK")
</pallas_src>

<mosaic_0001>
module attributes {stable_mosaic.version = 11 : i64} {
  func.func @_fused_trainer_kernel(%arg0: i32, %arg1: memref<2xi32, #tpu.memory_space<smem>>, %arg2: memref<8x16xi32, #tpu.memory_space<vmem>>, %arg3: memref<8x8xi32, #tpu.memory_space<vmem>>, %arg4: memref<1x8x8xi32, #tpu.memory_space<vmem>>, %arg5: memref<1x2x4x8xf32, #tpu.memory_space<vmem>>, %arg6: memref<128x128xf32, #tpu.memory_space<vmem>>, %arg7: memref<1x8x128xi32, #tpu.memory_space<vmem>>, %arg8: memref<1x192x128xf32, #tpu.memory_space<vmem>>, %arg9: memref<1x8x128xf32, #tpu.memory_space<vmem>>) attributes {dimension_semantics = [#tpu.dimension_semantics<parallel>], iteration_bounds = array<i64: 2>, scalar_prefetch = 1 : i64, scratch_operands = 0 : i64, tpu.core_type = #tpu.core_type<tc>, window_params = [{transform_indices = @transform_0, window_bounds = array<i64: 8, 16>}, {transform_indices = @transform_1, window_bounds = array<i64: 8, 8>}, {transform_indices = @transform_2, window_bounds = array<i64: 1, 8, 8>}, {transform_indices = @transform_3, window_bounds = array<i64: 1, 2, 4, 8>}, {pipeline_mode = #tpu.pipeline_mode<synchronous>, transform_indices = @transform_4, window_bounds = array<i64: 128, 128>}, {transform_indices = @transform_5, window_bounds = array<i64: 1, 8, 128>}, {transform_indices = @transform_6, window_bounds = array<i64: 1, 192, 128>}, {transform_indices = @transform_7, window_bounds = array<i64: 1, 8, 128>}]} {
    %c0 = arith.constant 0 : index
    %c0_0 = arith.constant 0 : index
    %0 = vector.load %arg2[%c0, %c0_0] : memref<8x16xi32, #tpu.memory_space<vmem>>, vector<8x16xi32>
    %c0_1 = arith.constant 0 : index
    %c0_2 = arith.constant 0 : index
    %1 = vector.load %arg3[%c0_1, %c0_2] : memref<8x8xi32, #tpu.memory_space<vmem>>, vector<8x8xi32>
    %c0_i32 = arith.constant 0 : i32
    %2 = vector.broadcast %c0_i32 : i32 to vector<8x16xi32>
    %3 = arith.cmpi eq, %0, %2 : vector<8x16xi32>
    %4 = arith.extui %3 : vector<8x16xi1> to vector<8x16xi32>
    %c0_i32_3 = arith.constant 0 : i32
    %5 = vector.broadcast %c0_i32_3 : i32 to vector<8x8xi32>
    %6 = arith.cmpi eq, %1, %5 : vector<8x8xi32>
    %7 = arith.extui %6 : vector<8x8xi1> to vector<8x8xi32>
    %c0_i32_4 = arith.constant 0 : i32
    %8 = vector.broadcast %c0_i32_4 : i32 to vector<8x128xi32>
    %c0_5 = arith.constant 0 : index
    %c0_6 = arith.constant 0 : index
    %c0_7 = arith.constant 0 : index
    %9 = vector.load %arg7[%c0_5, %c0_6, %c0_7] : memref<1x8x128xi32, #tpu.memory_space<vmem>>, vector<1x8x128xi32>
    %10 = vector.shape_cast %9 : vector<1x8x128xi32> to vector<8x128xi32>
    %11 = vector.shape_cast %8 : vector<8x128xi32> to vector<1x8x128xi32>
    tpu.vector_store %arg7[%c0_5, %c0_6, %c0_7], %11 {strides = array<i32>} : memref<1x8x128xi32, #tpu.memory_space<vmem>>, vector<1x8x128xi32>,
    %c0_8 = arith.constant 0 : index
    %c0_9 = arith.constant 0 : index
    %c0_10 = arith.constant 0 : index
    %12 = vector.load %arg7[%c0_8, %c0_9, %c0_10] : memref<1x8x128xi32, #tpu.memory_space<vmem>>, vector<1x8x16xi32>
    %13 = vector.shape_cast %12 : vector<1x8x16xi32> to vector<8x16xi32>
    %14 = vector.shape_cast %4 : vector<8x16xi32> to vector<1x8x16xi32>
    tpu.vector_store %arg7[%c0_8, %c0_9, %c0_10], %14 {strides = array<i32>} : memref<1x8x128xi32, #tpu.memory_space<vmem>>, vector<1x8x16xi32>,
    %c0_11 = arith.constant 0 : index
    %c0_12 = arith.constant 0 : index
    %c16 = arith.constant 16 : index
    %15 = vector.load %arg7[%c0_11, %c0_12, %c16] : memref<1x8x128xi32, #tpu.memory_space<vmem>>, vector<1x8x8xi32>
    %16 = vector.shape_cast %15 : vector<1x8x8xi32> to vector<8x8xi32>
    %17 = vector.shape_cast %7 : vector<8x8xi32> to vector<1x8x8xi32>
    tpu.vector_store %arg7[%c0_11, %c0_12, %c16], %17 {strides = array<i32>} : memref<1x8x128xi32, #tpu.memory_space<vmem>>, vector<1x8x8xi32>,
    %18 = tpu.iota {dimensions = array<i32: 2>} : vector<8x16x128xi32>
    %19 = vector.shape_cast %0 : vector<8x16xi32> to vector<8x16x1xi32>
    %20 = vector.broadcast %19 : vector<8x16x1xi32> to vector<8x16x128xi32>
    %21 = arith.cmpi eq, %20, %18 : vector<8x16x128xi32>
    %22 = arith.extui %21 : vector<8x16x128xi1> to vector<8x16x128xi32>
    %23 = arith.sitofp %22 : vector<8x16x128xi32> to vector<8x16x128xf32>
    %24 = vector.shape_cast %23 : vector<8x16x128xf32> to vector<128x128xf32>
    %25 = vector.shape_cast %1 : vector<8x8xi32> to vector<8x8x1xi32>
    %26 = vector.extract_strided_slice %18 {offsets = [0, 0, 0], sizes = [8, 8, 128], strides = [1, 1, 1]} : vector<8x16x128xi32> to vector<8x8x128xi32>
    %27 = vector.broadcast %25 : vector<8x8x1xi32> to vector<8x8x128xi32>
    %28 = arith.cmpi eq, %27, %26 : vector<8x8x128xi32>
    %29 = arith.extui %28 : vector<8x8x128xi1> to vector<8x8x128xi32>
    %30 = arith.sitofp %29 : vector<8x8x128xi32> to vector<8x8x128xf32>
    %31 = vector.shape_cast %30 : vector<8x8x128xf32> to vector<64x128xf32>
    %c0_13 = arith.constant 0 : index
    %c0_14 = arith.constant 0 : index
    %32 = vector.load %arg6[%c0_13, %c0_14] : memref<128x128xf32, #tpu.memory_space<vmem>>, vector<128x128xf32>
    %cst = arith.constant dense<0.000000e+00> : vector<128x128xf32>
    %33 = tpu.matmul %24, %32, %cst {dimension_numbers = #tpu.dot_dimension_numbers<[1], [0], [0], [1], [0, 0, 1, 1], [], []>} : vector<128x128xf32>, vector<128x128xf32>, vector<128x128xf32> -> vector<128x128xf32>
    %c0_15 = arith.constant 0 : index
    %c0_16 = arith.constant 0 : index
    %c0_17 = arith.constant 0 : index
    %34 = vector.load %arg8[%c0_15, %c0_16, %c0_17] : memref<1x192x128xf32, #tpu.memory_space<vmem>>, vector<1x128x128xf32>
    %35 = vector.shape_cast %34 : vector<1x128x128xf32> to vector<128x128xf32>
    %36 = vector.shape_cast %33 : vector<128x128xf32> to vector<1x128x128xf32>
    tpu.vector_store %arg8[%c0_15, %c0_16, %c0_17], %36 {strides = array<i32>} : memref<1x192x128xf32, #tpu.memory_space<vmem>>, vector<1x128x128xf32>,
    %cst_18 = arith.constant dense<0.000000e+00> : vector<64x128xf32>
    %37 = tpu.matmul %31, %32, %cst_18 {dimension_numbers = #tpu.dot_dimension_numbers<[1], [0], [0], [1], [0, 0, 1, 1], [], []>} : vector<64x128xf32>, vector<128x128xf32>, vector<64x128xf32> -> vector<64x128xf32>
    %c0_19 = arith.constant 0 : index
    %c128 = arith.constant 128 : index
    %c0_20 = arith.constant 0 : index
    %38 = vector.load %arg8[%c0_19, %c128, %c0_20] : memref<1x192x128xf32, #tpu.memory_space<vmem>>, vector<1x64x128xf32>
    %39 = vector.shape_cast %38 : vector<1x64x128xf32> to vector<64x128xf32>
    %40 = vector.shape_cast %37 : vector<64x128xf32> to vector<1x64x128xf32>
    tpu.vector_store %arg8[%c0_19, %c128, %c0_20], %40 {strides = array<i32>} : memref<1x192x128xf32, #tpu.memory_space<vmem>>, vector<1x64x128xf32>,
    %c0_21 = arith.constant 0 : index
    %c0_22 = arith.constant 0 : index
    %c0_23 = arith.constant 0 : index
    %c0_24 = arith.constant 0 : index
    %41 = vector.load %arg5[%c0_21, %c0_22, %c0_23, %c0_24] : memref<1x2x4x8xf32, #tpu.memory_space<vmem>>, vector<1x2x4x8xf32>
    %42 = vector.shape_cast %41 : vector<1x2x4x8xf32> to vector<2x4x8xf32>
    %43 = vector.extract_strided_slice %42 {offsets = [0, 0, 0], sizes = [1, 4, 8], strides = [1, 1, 1]} : vector<2x4x8xf32> to vector<1x4x8xf32>
    %44 = vector.shape_cast %43 : vector<1x4x8xf32> to vector<4x8xf32>
    %45 = vector.extract_strided_slice %42 {offsets = [1, 0, 0], sizes = [1, 4, 8], strides = [1, 1, 1]} : vector<2x4x8xf32> to vector<1x4x8xf32>
    %46 = vector.shape_cast %45 : vector<1x4x8xf32> to vector<4x8xf32>
    %47 = arith.mulf %44, %46 : vector<4x8xf32>
    %48 = vector.shape_cast %47 : vector<4x8xf32> to vector<1x4x8xf32>
    %cst_25 = arith.constant dense<0.000000e+00> : vector<1xf32>
    %49 = vector.multi_reduction <add>, %48, %cst_25 [1, 2] : vector<1x4x8xf32> to vector<1xf32>
    %50 = vector.shape_cast %49 : vector<1xf32> to vector<1x1x1xf32>
    %51 = vector.extract %50[0, 0, 0] : f32 from vector<1x1x1xf32>
    %cst_26 = arith.constant 0.000000e+00 : f32
    %52 = arith.subf %cst_26, %51 : f32
    %cst_27 = arith.constant 3.200000e+01 : f32
    %53 = arith.divf %52, %cst_27 : f32
    %c0_i32_28 = arith.constant 0 : i32
    %54 = vector.broadcast %c0_i32_28 : i32 to vector<8x8xi32>
    %55 = arith.cmpi ne, %1, %54 : vector<8x8xi32>
    %c0_29 = arith.constant 0 : index
    %c0_30 = arith.constant 0 : index
    %c0_31 = arith.constant 0 : index
    %56 = vector.load %arg4[%c0_29, %c0_30, %c0_31] : memref<1x8x8xi32, #tpu.memory_space<vmem>>, vector<1x8x8xi32>
    %57 = vector.shape_cast %56 : vector<1x8x8xi32> to vector<8x8xi32>
    %58 = arith.cmpi eq, %57, %1 : vector<8x8xi32>
    %59 = arith.andi %58, %55 : vector<8x8xi1>
    %60 = arith.extui %59 : vector<8x8xi1> to vector<8x8xi32>
    %61 = arith.sitofp %60 : vector<8x8xi32> to vector<8x8xf32>
    %62 = vector.shape_cast %61 : vector<8x8xf32> to vector<1x8x8xf32>
    %cst_32 = arith.constant dense<0.000000e+00> : vector<1xf32>
    %63 = vector.multi_reduction <add>, %62, %cst_32 [1, 2] : vector<1x8x8xf32> to vector<1xf32>
    %64 = vector.shape_cast %63 : vector<1xf32> to vector<1x1x1xf32>
    %65 = vector.extract %64[0, 0, 0] : f32 from vector<1x1x1xf32>
    %66 = arith.extui %55 : vector<8x8xi1> to vector<8x8xi32>
    %67 = arith.sitofp %66 : vector<8x8xi32> to vector<8x8xf32>
    %68 = vector.shape_cast %67 : vector<8x8xf32> to vector<1x8x8xf32>
    %cst_33 = arith.constant dense<0.000000e+00> : vector<1xf32>
    %69 = vector.multi_reduction <add>, %68, %cst_33 [1, 2] : vector<1x8x8xf32> to vector<1xf32>
    %70 = vector.shape_cast %69 : vector<1xf32> to vector<1x1x1xf32>
    %71 = vector.extract %70[0, 0, 0] : f32 from vector<1x1x1xf32>
    %cst_34 = arith.constant 1.000000e+00 : f32
    %72 = arith.maximumf %71, %cst_34 : f32
    %73 = arith.divf %65, %72 : f32
    %74 = tpu.iota {dimensions = array<i32: 1>} : vector<8x128xi32>
    %c0_i32_35 = arith.constant 0 : i32
    %75 = vector.broadcast %c0_i32_35 : i32 to vector<8x128xi32>
    %76 = arith.cmpi eq, %74, %75 : vector<8x128xi32>
    %cst_36 = arith.constant 0.000000e+00 : f32
    %77 = vector.broadcast %53 : f32 to vector<8x128xf32>
    %78 = vector.broadcast %cst_36 : f32 to vector<8x128xf32>
    %79 = arith.select %76, %77, %78 : vector<8x128xi1>, vector<8x128xf32>
    %c1_i32 = arith.constant 1 : i32
    %80 = vector.broadcast %c1_i32 : i32 to vector<8x128xi32>
    %81 = arith.cmpi eq, %74, %80 : vector<8x128xi32>
    %cst_37 = arith.constant 0.000000e+00 : f32
    %82 = vector.broadcast %73 : f32 to vector<8x128xf32>
    %83 = vector.broadcast %cst_37 : f32 to vector<8x128xf32>
    %84 = arith.select %81, %82, %83 : vector<8x128xi1>, vector<8x128xf32>
    %85 = arith.addf %79, %84 : vector<8x128xf32>
    %c0_38 = arith.constant 0 : index
    %c0_39 = arith.constant 0 : index
    %c0_40 = arith.constant 0 : index
    %86 = vector.load %arg9[%c0_38, %c0_39, %c0_40] : memref<1x8x128xf32, #tpu.memory_space<vmem>>, vector<1x8x128xf32>
    %87 = vector.shape_cast %86 : vector<1x8x128xf32> to vector<8x128xf32>
    %88 = vector.shape_cast %85 : vector<8x128xf32> to vector<1x8x128xf32>
    tpu.vector_store %arg9[%c0_38, %c0_39, %c0_40], %88 {strides = array<i32>} : memref<1x8x128xf32, #tpu.memory_space<vmem>>, vector<1x8x128xf32>,
    return
  }
  func.func @transform_0(%arg0: i32, %arg1: memref<2xi32, #tpu.memory_space<smem>>) -> (i32, i32) {
    %0 = arith.index_cast %arg0 : i32 to index
    %1 = memref.load %arg1[%0] : memref<2xi32, #tpu.memory_space<smem>>
    %c0_i32 = arith.constant 0 : i32
    %c0_i32_0 = arith.constant 0 : i32
    return %1, %c0_i32 : i32, i32
  }
  func.func @transform_1(%arg0: i32, %arg1: memref<2xi32, #tpu.memory_space<smem>>) -> (i32, i32) {
    %0 = arith.index_cast %arg0 : i32 to index
    %1 = memref.load %arg1[%0] : memref<2xi32, #tpu.memory_space<smem>>
    %c0_i32 = arith.constant 0 : i32
    %c0_i32_0 = arith.constant 0 : i32
    return %1, %c0_i32 : i32, i32
  }
  func.func @transform_2(%arg0: i32, %arg1: memref<2xi32, #tpu.memory_space<smem>>) -> (i32, i32, i32) {
    %c0_i32 = arith.constant 0 : i32
    %c0_i32_0 = arith.constant 0 : i32
    %c0_i32_1 = arith.constant 0 : i32
    return %arg0, %c0_i32, %c0_i32_0 : i32, i32, i32
  }
  func.func @transform_3(%arg0: i32, %arg1: memref<2xi32, #tpu.memory_space<smem>>) -> (i32, i32, i32, i32) {
    %c0_i32 = arith.constant 0 : i32
    %c0_i32_0 = arith.constant 0 : i32
    %c0_i32_1 = arith.constant 0 : i32
    %c0_i32_2 = arith.constant 0 : i32
    return %arg0, %c0_i32, %c0_i32_0, %c0_i32_1 : i32, i32, i32, i32
  }
  func.func @transform_4(%arg0: i32, %arg1: memref<2xi32, #tpu.memory_space<smem>>) -> (i32, i32) {
    %c0_i32 = arith.constant 0 : i32
    %c0_i32_0 = arith.constant 0 : i32
    %c0_i32_1 = arith.constant 0 : i32
    return %c0_i32, %c0_i32_0 : i32, i32
  }
  func.func @transform_5(%arg0: i32, %arg1: memref<2xi32, #tpu.memory_space<smem>>) -> (i32, i32, i32) {
    %c0_i32 = arith.constant 0 : i32
    %c0_i32_0 = arith.constant 0 : i32
    %c0_i32_1 = arith.constant 0 : i32
    return %arg0, %c0_i32, %c0_i32_0 : i32, i32, i32
  }
  func.func @transform_6(%arg0: i32, %arg1: memref<2xi32, #tpu.memory_space<smem>>) -> (i32, i32, i32) {
    %c0_i32 = arith.constant 0 : i32
    %c0_i32_0 = arith.constant 0 : i32
    %c0_i32_1 = arith.constant 0 : i32
    return %arg0, %c0_i32, %c0_i32_0 : i32, i32, i32
  }
  func.func @transform_7(%arg0: i32, %arg1: memref<2xi32, #tpu.memory_space<smem>>) -> (i32, i32, i32) {
    %c0_i32 = arith.constant 0 : i32
    %c0_i32_0 = arith.constant 0 : i32
    %c0_i32_1 = arith.constant 0 : i32
    return %arg0, %c0_i32, %c0_i32_0 : i32, i32, i32
  }
}

</mosaic_0001>

<llo_original>
// kernel: trainer_step.1
$region0: #{trainer_step.1}
  #allocation0 [shape = 'u32[]', space=smem, size = 0x4, offset = 0x4, fixed_abs, tag = 'smem constant byte address 0x4 - core index']
  #allocation1 [shape = 'u32[72,128]{1,0:T(1,128)}', space=vmem, size = 0x9000, scoped, tag = 'internal scratch']
  #allocation2 [shape = 's32[1]{0}', space=sflag, size = 0x4, scoped, tag = 'scoped memory for trainer_step.1']
  #allocation3 [shape = 'u8[512]{0}', space=smem, size = 0x200, scoped, tag = 'prefetched SMEM operand 0']
  %s0 = inlined_call_operand.vmem [shape: s32[2], index: 0, kind: input, shape index: {}]
  %s1 = inlined_call_operand.vmem [shape: s32[16,16], index: 1, kind: input, shape index: {}]
  %s2 = inlined_call_operand.vmem [shape: s32[16,8], index: 2, kind: input, shape index: {}]
  %s3 = inlined_call_operand.hbm [shape: s32[2,8,8], index: 3, kind: input, shape index: {}]
  %s4 = inlined_call_operand.hbm [shape: f32[2,2,4,8], index: 4, kind: input, shape index: {}]
  %s5 = inlined_call_operand.hbm [shape: f32[128,128], index: 5, kind: input, shape index: {}]
  %s6 = inlined_call_operand.vmem [shape: s32[2,8,128], index: 6, kind: output, shape index: {0}]
  %s7 = inlined_call_operand.vmem [shape: f32[2,192,128], index: 7, kind: output, shape index: {1}]
  %s8 = inlined_call_operand.vmem [shape: f32[2,8,128], index: 8, kind: output, shape index: {2}]
  %9 = xla_tuple %s6, %s7, %s8
  %s10 = sld [smem:[#allocation0]]
  $region81: #{trainer_step.1} parent=0
    _
  %s12 = ssub.s32 1, %s10
  %s13 = scalar_select 0, %s12, %s10
  %s15 = sshll.u32 %s0, 4
  %s16 = int_to_ptr.vmem [resolvable:$true] %s15
  %18 = dma.vmem_to_smem %s16, 16, [#allocation3], [#allocation2]
  %20 = dma.done [#allocation2], 16
  %21 = sfence
  $region1: #{trainer_step.1} parent=0
    #allocation4 [shape = 'u8[8192]{0}', space=vmem, size = 0x2000, scoped, tag = 'input window, operand 3']
    #allocation5 [shape = 's32[2]{0}', space=sflag, size = 0x8, scoped, tag = 'scoped memory for trainer_step.1']
    #allocation6 [shape = 'u8[8192]{0}', space=vmem, size = 0x2000, scoped, tag = 'input window, operand 4']
    #allocation7 [shape = 's32[2]{0}', space=sflag, size = 0x8, scoped, tag = 'scoped memory for trainer_step.1']
    #allocation8 [shape = 'u8[65536]{0}', space=vmem, size = 0x10000, scoped, tag = 'input window, operand 5, single buffered']
    %22 = vsyncpa [#allocation5], 0
    %s23 = scalar_lea.sflag [#allocation5], 1
    %24 = vsyncpa %s23, 0
    %25 = vsyncpa [#allocation7], 0
    %s26 = scalar_lea.sflag [#allocation7], 1
    %27 = vsyncpa %s26, 0
    loop: start=0, step=1, limit=4
    $region2: #{trainer_step.1} parent=1 // loop_pre_header
      _
    $region3: #{trainer_step.1} parent=1 // loop_header
      %s29 = sphi 0, %s33
      %p30 = scmp.ge.s32.totalorder %s29, 4
      %s41 = sphi 0, %s43
      %s44 = sphi 0, %s41
      %s45 = sphi 0, %s44
      %s61 = sphi 0, %s45
      %s69 = sphi 0, %s71
      %s72 = sphi 0, %s69
      %s73 = sphi 0, %s72
      %s89 = sphi 0, %s73
      %s95 = sphi 0, %s97
      %s98 = sphi 0, %s95
      %s99 = sphi 0, %s98
      %s115 = sphi 0, %s99
      %s121 = sphi 0, %s123
      %s124 = sphi 0, %s121
      %s125 = sphi 0, %s124
      %s141 = sphi 0, %s125
      %s145 = sphi 0, %s145
      %s147 = sphi 0, %s145
      %s148 = sphi 0, %s147
      %s162 = sphi 0, %s148
      %s168 = sphi 0, %s170
      %s171 = sphi 0, %s168
      %s172 = sphi 0, %s171
      %s188 = sphi 0, %s172
      %s194 = sphi 0, %s196
      %s197 = sphi 0, %s194
      %s198 = sphi 0, %s197
      %s214 = sphi 0, %s198
      %s220 = sphi 0, %s222
      %s223 = sphi 0, %s220
      %s224 = sphi 0, %s223
      %s240 = sphi 0, %s224
    $region4: #{trainer_step.1} parent=1 // loop_header_branch
      %32 = sbr.rel (%p30) target = $region8
    $region5: #{trainer_step.1} parent=1 // loop_body
      %s34 = ssub.s32 %s29, 1
      %s35 = ssub.s32 %s29, 2
      %s36 = sadd.s32 %s29, 1
      %s37 = sld [smem:[#allocation3 + %s29]]
      %s38 = sld [smem:[#allocation3 + %s36]]
      %s39 = ssub.s32 %s37, %s38
      %p40 = scmp.eq.s32.totalorder %s39, 0
      %s42 = sadd.s32 %s41, 1
      %s43 = scalar_select %p40, %s41, %s42
      %p46 = pneg %p40
      %p47 = scmp.eq.s32.totalorder %s29, 1
      %p48 = por %p46, %p47
      %p49 = scmp.ne.s32.totalorder %s41, %s44
      %p50 = scmp.eq.s32.totalorder %s29, 0
      %p51 = por %p49, %p50
      %p52 = scmp.ne.s32.totalorder %s41, %s44
      %p53 = scmp.eq.s32.totalorder %s34, 1
      %p54 = por %p52, %p53
      %p55 = scmp.ne.s32.totalorder %s44, %s45
      %p56 = scmp.eq.s32.totalorder %s34, 0
      %p57 = por %p55, %p56
      %p58 = scmp.ne.s32.totalorder %s44, %s45
      %p59 = scmp.eq.s32.totalorder %s35, 1
      %p60 = por %p58, %p59
      %p62 = scmp.ne.s32.totalorder %s45, %s61
      %p63 = scmp.eq.s32.totalorder %s35, 0
      %p64 = por %p62, %p63
      %s65 = sld [smem:[#allocation3 + %s29]]
      %s66 = sld [smem:[#allocation3 + %s36]]
      %s67 = ssub.s32 %s65, %s66
      %p68 = scmp.eq.s32.totalorder %s67, 0
      %s70 = sadd.s32 %s69, 1
      %s71 = scalar_select %p68, %s69, %s70
      %p74 = pneg %p68
      %p75 = scmp.eq.s32.totalorder %s29, 1
      %p76 = por %p74, %p75
      %p77 = scmp.ne.s32.totalorder %s69, %s72
      %p78 = scmp.eq.s32.totalorder %s29, 0
      %p79 = por %p77, %p78
      %p80 = scmp.ne.s32.totalorder %s69, %s72
      %p81 = scmp.eq.s32.totalorder %s34, 1
      %p82 = por %p80, %p81
      %p83 = scmp.ne.s32.totalorder %s72, %s73
      %p84 = scmp.eq.s32.totalorder %s34, 0
      %p85 = por %p83, %p84
      %p86 = scmp.ne.s32.totalorder %s72, %s73
      %p87 = scmp.eq.s32.totalorder %s35, 1
      %p88 = por %p86, %p87
      %p90 = scmp.ne.s32.totalorder %s73, %s89
      %p91 = scmp.eq.s32.totalorder %s35, 0
      %p92 = por %p90, %p91
      %s93 = ssub.s32 %s29, %s36
      %p94 = scmp.eq.s32.totalorder %s93, 0
      %s96 = sadd.s32 %s95, 1
      %s97 = scalar_select %p94, %s95, %s96
      %p100 = pneg %p94
      %p101 = scmp.eq.s32.totalorder %s29, 1
      %p102 = por %p100, %p101
      %p103 = scmp.ne.s32.totalorder %s95, %s98
      %p104 = scmp.eq.s32.totalorder %s29, 0
      %p105 = por %p103, %p104
      %p106 = scmp.ne.s32.totalorder %s95, %s98
      %p107 = scmp.eq.s32.totalorder %s34, 1
      %p108 = por %p106, %p107
      %p109 = scmp.ne.s32.totalorder %s98, %s99
      %p110 = scmp.eq.s32.totalorder %s34, 0
      %p111 = por %p109, %p110
      %p112 = scmp.ne.s32.totalorder %s98, %s99
      %p113 = scmp.eq.s32.totalorder %s35, 1
      %p114 = por %p112, %p113
      %p116 = scmp.ne.s32.totalorder %s99, %s115
      %p117 = scmp.eq.s32.totalorder %s35, 0
      %p118 = por %p116, %p117
      %s119 = ssub.s32 %s29, %s36
      %p120 = scmp.eq.s32.totalorder %s119, 0
      %s122 = sadd.s32 %s121, 1
      %s123 = scalar_select %p120, %s121, %s122
      %p126 = pneg %p120
      %p127 = scmp.eq.s32.totalorder %s29, 1
      %p128 = por %p126, %p127
      %p129 = scmp.ne.s32.totalorder %s121, %s124
      %p130 = scmp.eq.s32.totalorder %s29, 0
      %p131 = por %p129, %p130
      %p132 = scmp.ne.s32.totalorder %s121, %s124
      %p133 = scmp.eq.s32.totalorder %s34, 1
      %p134 = por %p132, %p133
      %p135 = scmp.ne.s32.totalorder %s124, %s125
      %p136 = scmp.eq.s32.totalorder %s34, 0
      %p137 = por %p135, %p136
      %p138 = scmp.ne.s32.totalorder %s124, %s125
      %p139 = scmp.eq.s32.totalorder %s35, 1
      %p140 = por %p138, %p139
      %p142 = scmp.ne.s32.totalorder %s125, %s141
      %p143 = scmp.eq.s32.totalorder %s35, 0
      %p144 = por %p142, %p143
      %s146 = sadd.s32 %s145, 1
      %p149 = scmp.eq.s32.totalorder %s29, 1
      %p150 = scmp.ne.s32.totalorder %s145, %s147
      %p151 = scmp.eq.s32.totalorder %s29, 0
      %p152 = por %p150, %p151
      %p153 = scmp.ne.s32.totalorder %s145, %s147
      %p154 = scmp.eq.s32.totalorder %s34, 1
      %p155 = por %p153, %p154
      %p156 = scmp.ne.s32.totalorder %s147, %s148
      %p157 = scmp.eq.s32.totalorder %s34, 0
      %p158 = por %p156, %p157
      %p159 = scmp.ne.s32.totalorder %s147, %s148
      %p160 = scmp.eq.s32.totalorder %s35, 1
      %p161 = por %p159, %p160
      %p163 = scmp.ne.s32.totalorder %s148, %s162
      %p164 = scmp.eq.s32.totalorder %s35, 0
      %p165 = por %p163, %p164
      %s166 = ssub.s32 %s29, %s36
      %p167 = scmp.eq.s32.totalorder %s166, 0
      %s169 = sadd.s32 %s168, 1
      %s170 = scalar_select %p167, %s168, %s169
      %p173 = pneg %p167
      %p174 = scmp.eq.s32.totalorder %s29, 1
      %p175 = por %p173, %p174
      %p176 = scmp.ne.s32.totalorder %s168, %s171
      %p177 = scmp.eq.s32.totalorder %s29, 0
      %p178 = por %p176, %p177
      %p179 = scmp.ne.s32.totalorder %s168, %s171
      %p180 = scmp.eq.s32.totalorder %s34, 1
      %p181 = por %p179, %p180
      %p182 = scmp.ne.s32.totalorder %s171, %s172
      %p183 = scmp.eq.s32.totalorder %s34, 0
      %p184 = por %p182, %p183
      %p185 = scmp.ne.s32.totalorder %s171, %s172
      %p186 = scmp.eq.s32.totalorder %s35, 1
      %p187 = por %p185, %p186
      %p189 = scmp.ne.s32.totalorder %s172, %s188
      %p190 = scmp.eq.s32.totalorder %s35, 0
      %p191 = por %p189, %p190
      %s192 = ssub.s32 %s29, %s36
      %p193 = scmp.eq.s32.totalorder %s192, 0
      %s195 = sadd.s32 %s194, 1
      %s196 = scalar_select %p193, %s194, %s195
      %p199 = pneg %p193
      %p200 = scmp.eq.s32.totalorder %s29, 1
      %p201 = por %p199, %p200
      %p202 = scmp.ne.s32.totalorder %s194, %s197
      %p203 = scmp.eq.s32.totalorder %s29, 0
      %p204 = por %p202, %p203
      %p205 = scmp.ne.s32.totalorder %s194, %s197
      %p206 = scmp.eq.s32.totalorder %s34, 1
      %p207 = por %p205, %p206
      %p208 = scmp.ne.s32.totalorder %s197, %s198
      %p209 = scmp.eq.s32.totalorder %s34, 0
      %p210 = por %p208, %p209
      %p211 = scmp.ne.s32.totalorder %s197, %s198
      %p212 = scmp.eq.s32.totalorder %s35, 1
      %p213 = por %p211, %p212
      %p215 = scmp.ne.s32.totalorder %s198, %s214
      %p216 = scmp.eq.s32.totalorder %s35, 0
      %p217 = por %p215, %p216
      %s218 = ssub.s32 %s29, %s36
      %p219 = scmp.eq.s32.totalorder %s218, 0
      %s221 = sadd.s32 %s220, 1
      %s222 = scalar_select %p219, %s220, %s221
      %p225 = pneg %p219
      %p226 = scmp.eq.s32.totalorder %s29, 1
      %p227 = por %p225, %p226
      %p228 = scmp.ne.s32.totalorder %s220, %s223
      %p229 = scmp.eq.s32.totalorder %s29, 0
      %p230 = por %p228, %p229
      %p231 = scmp.ne.s32.totalorder %s220, %s223
      %p232 = scmp.eq.s32.totalorder %s34, 1
      %p233 = por %p231, %p232
      %p234 = scmp.ne.s32.totalorder %s223, %s224
      %p235 = scmp.eq.s32.totalorder %s34, 0
      %p236 = por %p234, %p235
      %p237 = scmp.ne.s32.totalorder %s223, %s224
      %p238 = scmp.eq.s32.totalorder %s35, 1
      %p239 = por %p237, %p238
      %p241 = scmp.ne.s32.totalorder %s224, %s240
      %p242 = scmp.eq.s32.totalorder %s35, 0
      %p243 = por %p241, %p242
      %p244 = scmp.le.s32.totalorder 1, %s29
      %p245 = scmp.lt.s32.totalorder %s29, 3
      %p246 = pnand %p244, %p245
      %p247 = pneg %p246
      // Predicated region
      $region9: #{trainer_step.1} parent=5 // pred_check
        _
      $region10: #{trainer_step.1} parent=5 // pred_check_branch
        %249 = sbr.rel (%p246) target = $region12
      $region11: #{trainer_step.1} parent=5 // pred_region
        %s250 = ssub.s32 %s29, 1
        // Predicated region
        $region13: #{trainer_step.1} parent=11 // pred_check
          %p251 = pneg %p158
        $region14: #{trainer_step.1} parent=11 // pred_check_branch
          %253 = sbr.rel (%p251) target = $region16
        $region15: #{trainer_step.1} parent=11 // pred_region
          %255 = vsyncadd [#allocation7], 0
          %s256 = sshll.u32 %s5, 4
          %s257 = int_to_ptr.hbm [resolvable:$true] %s256
          %s258 = sshll.u32 [#allocation8], 4
          %s259 = int_to_ptr.vmem [resolvable:$true] %s258
          %264 = dma.hbm_to_vmem [thread:$0]  %s257, 2048, %s259, [#allocation7], 128, 128, 8
        $region16: #{trainer_step.1} parent=11 // pred_fallthru
          _
      $region12: #{trainer_step.1} parent=5 // pred_fallthru
        _
      %p265 = scmp.lt.s32.totalorder %s29, 2
      // Predicated region
      $region17: #{trainer_step.1} parent=5 // pred_check
        %p266 = pneg %p265
      $region18: #{trainer_step.1} parent=5 // pred_check_branch
        %268 = sbr.rel (%p266) target = $region20
      $region19: #{trainer_step.1} parent=5 // pred_region
        // Predicated region
        $region21: #{trainer_step.1} parent=19 // pred_check
          %p269 = pneg %p51
        $region22: #{trainer_step.1} parent=19 // pred_check_branch
          %271 = sbr.rel (%p269) target = $region24
        $region23: #{trainer_step.1} parent=19 // pred_region
          %s272 = sld [smem:[#allocation3 + %s29]]
          %p273 = scmp.lt.s32.totalorder %s272, 1
          %s274 = scalar_select %p273, %s272, 1
          %s275 = smul.addr %s274, 8
          %s276 = scalar_lea.vmem %s1, %s275
          %s277 = sld [smem:[#allocation3 + %s29]]
        $region24: #{trainer_step.1} parent=19 // pred_fallthru
          _
        // Predicated region
        $region25: #{trainer_step.1} parent=19 // pred_check
          %p278 = pneg %p79
        $region26: #{trainer_step.1} parent=19 // pred_check_branch
          %280 = sbr.rel (%p278) target = $region28
        $region27: #{trainer_step.1} parent=19 // pred_region
          %s281 = sld [smem:[#allocation3 + %s29]]
          %p282 = scmp.lt.s32.totalorder %s281, 1
          %s283 = scalar_select %p282, %s281, 1
          %s284 = smul.addr %s283, 8
          %s285 = scalar_lea.vmem %s2, %s284
          %s286 = sld [smem:[#allocation3 + %s29]]
        $region28: #{trainer_step.1} parent=19 // pred_fallthru
          _
        // Predicated region
        $region29: #{trainer_step.1} parent=19 // pred_check
          %p287 = pneg %p105
        $region30: #{trainer_step.1} parent=19 // pred_check_branch
          %289 = sbr.rel (%p287) target = $region32
        $region31: #{trainer_step.1} parent=19 // pred_region
          %s290 = sand.u32 %s95, 1
          %s291 = scalar_lea.sflag [#allocation5], %s290
          %s292 = sand.u32 %s95, 1
          %s293 = smul.addr %s292, 8
          %s294 = scalar_lea.vmem [#allocation4], %s293
          %296 = vsyncadd %s291, 0
          %s297 = smul.addr %s29, 8
          %s298 = scalar_lea.hbm %s3, %s297
          %s300 = sshll.u32 %s298, 4
          %s301 = int_to_ptr.hbm [resolvable:$true] %s300
          %s302 = sshll.u32 %s294, 4
          %s303 = int_to_ptr.vmem [resolvable:$true] %s302
          %305 = dma.hbm_to_vmem [thread:$0]  %s301, 128, %s303, %s291
        $region32: #{trainer_step.1} parent=19 // pred_fallthru
          _
        // Predicated region
        $region33: #{trainer_step.1} parent=19 // pred_check
          %p306 = pneg %p131
        $region34: #{trainer_step.1} parent=19 // pred_check_branch
          %308 = sbr.rel (%p306) target = $region36
        $region35: #{trainer_step.1} parent=19 // pred_region
          %s309 = sand.u32 %s29, 1
          %s310 = scalar_lea.sflag [#allocation7], %s309
          %s311 = sand.u32 %s121, 1
          %s312 = smul.addr %s311, 8
          %s313 = scalar_lea.vmem [#allocation6], %s312
          %315 = vsyncadd %s310, 0
          %s316 = smul.addr %s29, 2
          %s317 = smul.addr %s316, 4
          %s318 = scalar_lea.hbm %s4, %s317
          %s319 = sshll.u32 %s318, 4
          %s320 = int_to_ptr.hbm [resolvable:$true] %s319
          %s321 = sshll.u32 %s313, 4
          %s322 = int_to_ptr.vmem [resolvable:$true] %s321
          %327 = dma.hbm_to_vmem [thread:$0]  %s320, 128, %s322, %s310, 64, 64, 4
        $region36: #{trainer_step.1} parent=19 // pred_fallthru
          _
      $region20: #{trainer_step.1} parent=5 // pred_fallthru
        _
      %p328 = scmp.le.s32.totalorder 1, %s29
      %p329 = scmp.lt.s32.totalorder %s29, 3
      %p330 = pnand %p328, %p329
      %p331 = pneg %p330
      // Predicated region
      $region37: #{trainer_step.1} parent=5 // pred_check
        _
      $region38: #{trainer_step.1} parent=5 // pred_check_branch
        %333 = sbr.rel (%p330) target = $region40
      $region39: #{trainer_step.1} parent=5 // pred_region
        %s334 = ssub.s32 %s29, 1
        %s335 = sand.u32 %s98, 1
        %s336 = scalar_lea.sflag [#allocation5], %s335
        %s337 = sand.u32 %s98, 1
        %s338 = smul.addr %s337, 8
        %s339 = scalar_lea.vmem [#allocation4], %s338
        // Predicated region
        $region41: #{trainer_step.1} parent=39 // pred_check
          %p340 = pneg %p111
        $region42: #{trainer_step.1} parent=39 // pred_check_branch
          %342 = sbr.rel (%p340) target = $region44
        $region43: #{trainer_step.1} parent=39 // pred_region
          %344 = dma.done %s336, 128
        $region44: #{trainer_step.1} parent=39 // pred_fallthru
          _
        %s345 = sand.u32 %s34, 1
        %s346 = scalar_lea.sflag [#allocation7], %s345
        %s347 = sand.u32 %s124, 1
        %s348 = smul.addr %s347, 8
        %s349 = scalar_lea.vmem [#allocation6], %s348
        // Predicated region
        $region45: #{trainer_step.1} parent=39 // pred_check
          %p350 = pneg %p137
        $region46: #{trainer_step.1} parent=39 // pred_check_branch
          %352 = sbr.rel (%p350) target = $region48
        $region47: #{trainer_step.1} parent=39 // pred_region
          %354 = dma.done %s346, 128
        $region48: #{trainer_step.1} parent=39 // pred_fallthru
          _
        // Predicated region
        $region49: #{trainer_step.1} parent=39 // pred_check
          %p355 = pneg %p158
        $region50: #{trainer_step.1} parent=39 // pred_check_branch
          %357 = sbr.rel (%p355) target = $region52
        $region51: #{trainer_step.1} parent=39 // pred_region
          %359 = dma.done [#allocation7], 2048
        $region52: #{trainer_step.1} parent=39 // pred_fallthru
          _
        %s360 = sld [smem:[#allocation3 + %s34]]
        %p361 = scmp.lt.s32.totalorder %s360, 1
        %s362 = scalar_select %p361, %s360, 1
        %s363 = smul.addr %s362, 8
        %s364 = scalar_lea.vmem %s1, %s363
        %p365 = pneg %p57
        %p366 = pneg %p54
        %s367 = sld [smem:[#allocation3 + %s34]]
        %p368 = scmp.lt.s32.totalorder %s367, 1
        %s369 = scalar_select %p368, %s367, 1
        %s370 = smul.addr %s369, 8
        %s371 = scalar_lea.vmem %s2, %s370
        %p372 = pneg %p85
        %p373 = pneg %p82
        %s374 = sand.u32 %s98, 1
        %s375 = scalar_lea.sflag [#allocation5], %s374
        %s376 = sand.u32 %s98, 1
        %s377 = smul.addr %s376, 8
        %s378 = scalar_lea.vmem [#allocation4], %s377
        %p379 = pneg %p111
        %p380 = pneg %p108
        %s381 = sand.u32 %s34, 1
        %s382 = scalar_lea.sflag [#allocation7], %s381
        %s383 = sand.u32 %s124, 1
        %s384 = smul.addr %s383, 8
        %s385 = scalar_lea.vmem [#allocation6], %s384
        %p386 = pneg %p137
        %p387 = pneg %p134
        %p388 = pneg %p158
        %p389 = pneg %p155
        %p390 = pneg %p184
        %p391 = pneg %p181
        %p392 = scmp.lt.s32.totalorder %s34, 1
        %s393 = scalar_select %p392, %s34, 1
        %s394 = smul.addr %s393, 8
        %s395 = scalar_lea.vmem %s6, %s394
        %p396 = pneg %p210
        %p397 = pneg %p207
        %p398 = scmp.lt.s32.totalorder %s34, 1
        %s399 = scalar_select %p398, %s34, 1
        %s400 = smul.addr %s399, 24
        %s401 = smul.addr %s400, 8
        %s402 = scalar_lea.vmem %s7, %s401
        %p403 = pneg %p236
        %p404 = pneg %p233
        %p405 = scmp.lt.s32.totalorder %s34, 1
        %s406 = scalar_select %p405, %s34, 1
        %s407 = smul.addr %s406, 8
        %s408 = scalar_lea.vmem %s8, %s407
        %s409 = sld [smem:[#allocation3 + %s34]]
        %p410 = scmp.lt.s32.totalorder %s409, 1
        %s411 = scalar_select %p410, %s409, 1
        %s412 = smul.addr %s411, 8
        %s413 = scalar_lea.vmem %s1, %s412
        %s414 = sld [smem:[#allocation3 + %s34]]
        %s415 = sld [smem:[#allocation3 + %s34]]
        %p416 = scmp.lt.s32.totalorder %s415, 1
        %s417 = scalar_select %p416, %s415, 1
        %s418 = smul.addr %s417, 8
        %s419 = scalar_lea.vmem %s2, %s418
        %s420 = sld [smem:[#allocation3 + %s34]]
        %p421 = scmp.lt.s32.totalorder %s34, 1
        %s422 = scalar_select %p421, %s34, 1
        %s423 = smul.addr %s422, 8
        %s424 = scalar_lea.vmem %s6, %s423
        %p425 = scmp.lt.s32.totalorder %s34, 1
        %s426 = scalar_select %p425, %s34, 1
        %s427 = smul.addr %s426, 24
        %s428 = smul.addr %s427, 8
        %s429 = scalar_lea.vmem %s7, %s428
        %p430 = scmp.lt.s32.totalorder %s34, 1
        %s431 = scalar_select %p430, %s34, 1
        %s432 = smul.addr %s431, 8
        %s433 = scalar_lea.vmem %s8, %s432
        %v434 = vld [vmem:[%s413] sm:$0xff]
        %v435 = vld [vmem:[%s419] sm:$0xff]
        %vm436 = vcmp.eq.s32.totalorder %v434, 0
        %v437 = vsel %vm436, 1, 0
        %vm438 = vcmp.eq.s32.totalorder %v435, 0
        %v439 = vsel %vm438, 1, 0
        %440 = vst [vmem:[%s424] sm:$0xff] 0
        %vm441 = vcmask 130048
        %442 = vst.msk [vmem:[%s424] sm:$0xff] %vm441, %v437
        %443 = vrot.lane.b32.xlu0 %v439, 16
        %v444 = vpop.permute.xlu0 %443
        %vm445 = vcmask 195712
        %446 = vst.msk [vmem:[%s424] sm:$0xff] %vm445, %v444
        %v447 = vlaneseq
        %v448 = vand.u32 %v447, 127
        %v449 = vperm.slane %v434, 0
        %v450 = vlaneseq
        %v451 = vshrl.u32 %v450, 7
        %453 = vset.pattern.permute.xlu0 %v451
        %454 = vperm.xlu0 %453, %v449
        %v455 = vpop.permute.xlu0 %454
        %v456 = vlaneseq
        %v457 = vshrl.u32 %v456, 7
        %v458 = vadd.s32 %v457, 8
        %459 = vset.pattern.permute.xlu0 %v458
        %460 = vperm.xlu0 %459, %v449
        %v461 = vpop.permute.xlu0 %460
        %v462 = vperm.slane %v434, 1
        %v463 = vlaneseq
        %v464 = vshrl.u32 %v463, 7
        %466 = vset.pattern.permute.xlu0 %v464
        %467 = vperm.xlu0 %466, %v462
        %v468 = vpop.permute.xlu0 %467
        %v469 = vlaneseq
        %v470 = vshrl.u32 %v469, 7
        %v471 = vadd.s32 %v470, 8
        %472 = vset.pattern.permute.xlu0 %v471
        %473 = vperm.xlu0 %472, %v462
        %v474 = vpop.permute.xlu0 %473
        %v475 = vperm.slane %v434, 2
        %v476 = vlaneseq
        %v477 = vshrl.u32 %v476, 7
        %479 = vset.pattern.permute.xlu0 %v477
        %480 = vperm.xlu0 %479, %v475
        %v481 = vpop.permute.xlu0 %480
        %v482 = vlaneseq
        %v483 = vshrl.u32 %v482, 7
        %v484 = vadd.s32 %v483, 8
        %485 = vset.pattern.permute.xlu0 %v484
        %486 = vperm.xlu0 %485, %v475
        %v487 = vpop.permute.xlu0 %486
        %v488 = vperm.slane %v434, 3
        %v489 = vlaneseq
        %v490 = vshrl.u32 %v489, 7
        %492 = vset.pattern.permute.xlu0 %v490
        %493 = vperm.xlu0 %492, %v488
        %v494 = vpop.permute.xlu0 %493
        %v495 = vlaneseq
        %v496 = vshrl.u32 %v495, 7
        %v497 = vadd.s32 %v496, 8
        %498 = vset.pattern.permute.xlu0 %v497
        %499 = vperm.xlu0 %498, %v488
        %v500 = vpop.permute.xlu0 %499
        %v501 = vperm.slane %v434, 4
        %v502 = vlaneseq
        %v503 = vshrl.u32 %v502, 7
        %505 = vset.pattern.permute.xlu0 %v503
        %506 = vperm.xlu0 %505, %v501
        %v507 = vpop.permute.xlu0 %506
        %v508 = vlaneseq
        %v509 = vshrl.u32 %v508, 7
        %v510 = vadd.s32 %v509, 8
        %511 = vset.pattern.permute.xlu0 %v510
        %512 = vperm.xlu0 %511, %v501
        %v513 = vpop.permute.xlu0 %512
        %v514 = vperm.slane %v434, 5
        %v515 = vlaneseq
        %v516 = vshrl.u32 %v515, 7
        %518 = vset.pattern.permute.xlu0 %v516
        %519 = vperm.xlu0 %518, %v514
        %v520 = vpop.permute.xlu0 %519
        %v521 = vlaneseq
        %v522 = vshrl.u32 %v521, 7
        %v523 = vadd.s32 %v522, 8
        %524 = vset.pattern.permute.xlu0 %v523
        %525 = vperm.xlu0 %524, %v514
        %v526 = vpop.permute.xlu0 %525
        %v527 = vperm.slane %v434, 6
        %v528 = vlaneseq
        %v529 = vshrl.u32 %v528, 7
        %531 = vset.pattern.permute.xlu0 %v529
        %532 = vperm.xlu0 %531, %v527
        %v533 = vpop.permute.xlu0 %532
        %v534 = vlaneseq
        %v535 = vshrl.u32 %v534, 7
        %v536 = vadd.s32 %v535, 8
        %537 = vset.pattern.permute.xlu0 %v536
        %538 = vperm.xlu0 %537, %v527
        %v539 = vpop.permute.xlu0 %538
        %v540 = vperm.slane %v434, 7
        %v541 = vlaneseq
        %v542 = vshrl.u32 %v541, 7
        %544 = vset.pattern.permute.xlu0 %v542
        %545 = vperm.xlu0 %544, %v540
        %v546 = vpop.permute.xlu0 %545
        %v547 = vlaneseq
        %v548 = vshrl.u32 %v547, 7
        %v549 = vadd.s32 %v548, 8
        %550 = vset.pattern.permute.xlu0 %v549
        %551 = vperm.xlu0 %550, %v540
        %v552 = vpop.permute.xlu0 %551
        %vm553 = vcmp.eq.s32.totalorder %v455, %v448
        %vm554 = vcmp.eq.s32.totalorder %v461, %v448
        %vm555 = vcmp.eq.s32.totalorder %v468, %v448
        %vm556 = vcmp.eq.s32.totalorder %v474, %v448
        %vm557 = vcmp.eq.s32.totalorder %v481, %v448
        %vm558 = vcmp.eq.s32.totalorder %v487, %v448
        %vm559 = vcmp.eq.s32.totalorder %v494, %v448
        %vm560 = vcmp.eq.s32.totalorder %v500, %v448
        %vm561 = vcmp.eq.s32.totalorder %v507, %v448
        %vm562 = vcmp.eq.s32.totalorder %v513, %v448
        %vm563 = vcmp.eq.s32.totalorder %v520, %v448
        %vm564 = vcmp.eq.s32.totalorder %v526, %v448
        %vm565 = vcmp.eq.s32.totalorder %v533, %v448
        %vm566 = vcmp.eq.s32.totalorder %v539, %v448
        %vm567 = vcmp.eq.s32.totalorder %v546, %v448
        %vm568 = vcmp.eq.s32.totalorder %v552, %v448
        %v569 = vsel %vm553, 1, 0
        %v570 = vsel %vm554, 1, 0
        %v571 = vsel %vm555, 1, 0
        %v572 = vsel %vm556, 1, 0
        %v573 = vsel %vm557, 1, 0
        %v574 = vsel %vm558, 1, 0
        %v575 = vsel %vm559, 1, 0
        %v576 = vsel %vm560, 1, 0
        %v577 = vsel %vm561, 1, 0
        %v578 = vsel %vm562, 1, 0
        %v579 = vsel %vm563, 1, 0
        %v580 = vsel %vm564, 1, 0
        %v581 = vsel %vm565, 1, 0
        %v582 = vsel %vm566, 1, 0
        %v583 = vsel %vm567, 1, 0
        %v584 = vsel %vm568, 1, 0
        %v585 = vcvt.s32.f32 %v569
        %v586 = vcvt.s32.f32 %v570
        %v587 = vcvt.s32.f32 %v571
        %v588 = vcvt.s32.f32 %v572
        %v589 = vcvt.s32.f32 %v573
        %v590 = vcvt.s32.f32 %v574
        %v591 = vcvt.s32.f32 %v575
        %v592 = vcvt.s32.f32 %v576
        %v593 = vcvt.s32.f32 %v577
        %v594 = vcvt.s32.f32 %v578
        %v595 = vcvt.s32.f32 %v579
        %v596 = vcvt.s32.f32 %v580
        %v597 = vcvt.s32.f32 %v581
        %v598 = vcvt.s32.f32 %v582
        %v599 = vcvt.s32.f32 %v583
        %v600 = vcvt.s32.f32 %v584
        %v601 = vperm.slane %v435, 0
        %v602 = vlaneseq
        %v603 = vshrl.u32 %v602, 7
        %605 = vset.pattern.permute.xlu0 %v603
        %606 = vperm.xlu0 %605, %v601
        %v607 = vpop.permute.xlu0 %606
        %v608 = vperm.slane %v435, 1
        %v609 = vlaneseq
        %v610 = vshrl.u32 %v609, 7
        %612 = vset.pattern.permute.xlu0 %v610
        %613 = vperm.xlu0 %612, %v608
        %v614 = vpop.permute.xlu0 %613
        %v615 = vperm.slane %v435, 2
        %v616 = vlaneseq
        %v617 = vshrl.u32 %v616, 7
        %619 = vset.pattern.permute.xlu0 %v617
        %620 = vperm.xlu0 %619, %v615
        %v621 = vpop.permute.xlu0 %620
        %v622 = vperm.slane %v435, 3
        %v623 = vlaneseq
        %v624 = vshrl.u32 %v623, 7
        %626 = vset.pattern.permute.xlu0 %v624
        %627 = vperm.xlu0 %626, %v622
        %v628 = vpop.permute.xlu0 %627
        %v629 = vperm.slane %v435, 4
        %v630 = vlaneseq
        %v631 = vshrl.u32 %v630, 7
        %633 = vset.pattern.permute.xlu0 %v631
        %634 = vperm.xlu0 %633, %v629
        %v635 = vpop.permute.xlu0 %634
        %v636 = vperm.slane %v435, 5
        %v637 = vlaneseq
        %v638 = vshrl.u32 %v637, 7
        %640 = vset.pattern.permute.xlu0 %v638
        %641 = vperm.xlu0 %640, %v636
        %v642 = vpop.permute.xlu0 %641
        %v643 = vperm.slane %v435, 6
        %v644 = vlaneseq
        %v645 = vshrl.u32 %v644, 7
        %647 = vset.pattern.permute.xlu0 %v645
        %648 = vperm.xlu0 %647, %v643
        %v649 = vpop.permute.xlu0 %648
        %v650 = vperm.slane %v435, 7
        %v651 = vlaneseq
        %v652 = vshrl.u32 %v651, 7
        %654 = vset.pattern.permute.xlu0 %v652
        %655 = vperm.xlu0 %654, %v650
        %v656 = vpop.permute.xlu0 %655
        %vm657 = vcmp.eq.s32.totalorder %v607, %v448
        %vm658 = vcmp.eq.s32.totalorder %v614, %v448
        %vm659 = vcmp.eq.s32.totalorder %v621, %v448
        %vm660 = vcmp.eq.s32.totalorder %v628, %v448
        %vm661 = vcmp.eq.s32.totalorder %v635, %v448
        %vm662 = vcmp.eq.s32.totalorder %v642, %v448
        %vm663 = vcmp.eq.s32.totalorder %v649, %v448
        %vm664 = vcmp.eq.s32.totalorder %v656, %v448
        %v665 = vsel %vm657, 1, 0
        %v666 = vsel %vm658, 1, 0
        %v667 = vsel %vm659, 1, 0
        %v668 = vsel %vm660, 1, 0
        %v669 = vsel %vm661, 1, 0
        %v670 = vsel %vm662, 1, 0
        %v671 = vsel %vm663, 1, 0
        %v672 = vsel %vm664, 1, 0
        %v673 = vcvt.s32.f32 %v665
        %v674 = vcvt.s32.f32 %v666
        %v675 = vcvt.s32.f32 %v667
        %v676 = vcvt.s32.f32 %v668
        %v677 = vcvt.s32.f32 %v669
        %v678 = vcvt.s32.f32 %v670
        %v679 = vcvt.s32.f32 %v671
        %v680 = vcvt.s32.f32 %v672
        %v681 = vld [vmem:[#allocation8] sm:$0xff]
        %v682 = vld [vmem:[#allocation8 + $0x8] sm:$0xff]
        %v683 = vld [vmem:[#allocation8 + $0x10] sm:$0xff]
        %v684 = vld [vmem:[#allocation8 + $0x18] sm:$0xff]
        %v685 = vld [vmem:[#allocation8 + $0x20] sm:$0xff]
        %v686 = vld [vmem:[#allocation8 + $0x28] sm:$0xff]
        %v687 = vld [vmem:[#allocation8 + $0x30] sm:$0xff]
        %v688 = vld [vmem:[#allocation8 + $0x38] sm:$0xff]
        %v689 = vld [vmem:[#allocation8 + $0x40] sm:$0xff]
        %v690 = vld [vmem:[#allocation8 + $0x48] sm:$0xff]
        %v691 = vld [vmem:[#allocation8 + $0x50] sm:$0xff]
        %v692 = vld [vmem:[#allocation8 + $0x58] sm:$0xff]
        %v693 = vld [vmem:[#allocation8 + $0x60] sm:$0xff]
        %v694 = vld [vmem:[#allocation8 + $0x68] sm:$0xff]
        %v695 = vld [vmem:[#allocation8 + $0x70] sm:$0xff]
        %v696 = vld [vmem:[#allocation8 + $0x78] sm:$0xff]
        %697 = vmatpush.msra.mxu0 %v696
        %698 = vmatpush.msra.mxu0 %v695
        %699 = vmatpush.msra.mxu0 %v694
        %700 = vmatpush.msra.mxu0 %v693
        %701 = vmatpush.msra.mxu0 %v692
        %702 = vmatpush.msra.mxu0 %v691
        %703 = vmatpush.msra.mxu0 %v690
        %704 = vmatpush.msra.mxu0 %v689
        %705 = vmatpush.msra.mxu0 %v688
        %706 = vmatpush.msra.mxu0 %v687
        %707 = vmatpush.msra.mxu0 %v686
        %708 = vmatpush.msra.mxu0 %v685
        %709 = vmatpush.msra.mxu0 %v684
        %710 = vmatpush.msra.mxu0 %v683
        %711 = vmatpush.msra.mxu0 %v682
        %712 = vmatpush.msra.mxu0 %v681
        %713 = vmatmul.f32.gmra.mxu0 %v585
        %v714 = vpop.f32.mrf.mxu0
        %v715 = vadd.f32 0.0, %v714
        %716 = vmatmul.f32.gmra.mxu0 %v586
        %v717 = vpop.f32.mrf.mxu0
        %v718 = vadd.f32 0.0, %v717
        %719 = vmatmul.f32.gmra.mxu0 %v587
        %v720 = vpop.f32.mrf.mxu0
        %v721 = vadd.f32 0.0, %v720
        %722 = vmatmul.f32.gmra.mxu0 %v588
        %v723 = vpop.f32.mrf.mxu0
        %v724 = vadd.f32 0.0, %v723
        %725 = vmatmul.f32.gmra.mxu0 %v589
        %v726 = vpop.f32.mrf.mxu0
        %v727 = vadd.f32 0.0, %v726
        %728 = vmatmul.f32.gmra.mxu0 %v590
        %v729 = vpop.f32.mrf.mxu0
        %v730 = vadd.f32 0.0, %v729
        %731 = vmatmul.f32.gmra.mxu0 %v591
        %v732 = vpop.f32.mrf.mxu0
        %v733 = vadd.f32 0.0, %v732
        %734 = vmatmul.f32.gmra.mxu0 %v592
        %v735 = vpop.f32.mrf.mxu0
        %v736 = vadd.f32 0.0, %v735
        %737 = vmatmul.f32.gmra.mxu0 %v593
        %v738 = vpop.f32.mrf.mxu0
        %v739 = vadd.f32 0.0, %v738
        %740 = vmatmul.f32.gmra.mxu0 %v594
        %v741 = vpop.f32.mrf.mxu0
        %v742 = vadd.f32 0.0, %v741
        %743 = vmatmul.f32.gmra.mxu0 %v595
        %v744 = vpop.f32.mrf.mxu0
        %v745 = vadd.f32 0.0, %v744
        %746 = vmatmul.f32.gmra.mxu0 %v596
        %v747 = vpop.f32.mrf.mxu0
        %v748 = vadd.f32 0.0, %v747
        %749 = vmatmul.f32.gmra.mxu0 %v597
        %v750 = vpop.f32.mrf.mxu0
        %v751 = vadd.f32 0.0, %v750
        %752 = vmatmul.f32.gmra.mxu0 %v598
        %v753 = vpop.f32.mrf.mxu0
        %v754 = vadd.f32 0.0, %v753
        %755 = vmatmul.f32.gmra.mxu0 %v599
        %v756 = vpop.f32.mrf.mxu0
        %v757 = vadd.f32 0.0, %v756
        %758 = vmatmul.f32.gmra.mxu0 %v600
        %v759 = vpop.f32.mrf.mxu0
        %v760 = vadd.f32 0.0, %v759
        %761 = vdwg.mxu0
        %762 = vst [vmem:[%s429] sm:$0xff] %v715
        %763 = vst [vmem:[%s429 + $0x8] sm:$0xff] %v718
        %764 = vst [vmem:[%s429 + $0x10] sm:$0xff] %v721
        %765 = vst [vmem:[%s429 + $0x18] sm:$0xff] %v724
        %766 = vst [vmem:[%s429 + $0x20] sm:$0xff] %v727
        %767 = vst [vmem:[%s429 + $0x28] sm:$0xff] %v730
        %768 = vst [vmem:[%s429 + $0x30] sm:$0xff] %v733
        %769 = vst [vmem:[%s429 + $0x38] sm:$0xff] %v736
        %770 = vst [vmem:[%s429 + $0x40] sm:$0xff] %v739
        %771 = vst [vmem:[%s429 + $0x48] sm:$0xff] %v742
        %772 = vst [vmem:[%s429 + $0x50] sm:$0xff] %v745
        %773 = vst [vmem:[%s429 + $0x58] sm:$0xff] %v748
        %774 = vst [vmem:[%s429 + $0x60] sm:$0xff] %v751
        %775 = vst [vmem:[%s429 + $0x68] sm:$0xff] %v754
        %776 = vst [vmem:[%s429 + $0x70] sm:$0xff] %v757
        %777 = vst [vmem:[%s429 + $0x78] sm:$0xff] %v760
        %778 = vmatpush.msra.mxu0 %v696
        %779 = vmatpush.msra.mxu0 %v695
        %780 = vmatpush.msra.mxu0 %v694
        %781 = vmatpush.msra.mxu0 %v693
        %782 = vmatpush.msra.mxu0 %v692
        %783 = vmatpush.msra.mxu0 %v691
        %784 = vmatpush.msra.mxu0 %v690
        %785 = vmatpush.msra.mxu0 %v689
        %786 = vmatpush.msra.mxu0 %v688
        %787 = vmatpush.msra.mxu0 %v687
        %788 = vmatpush.msra.mxu0 %v686
        %789 = vmatpush.msra.mxu0 %v685
        %790 = vmatpush.msra.mxu0 %v684
        %791 = vmatpush.msra.mxu0 %v683
        %792 = vmatpush.msra.mxu0 %v682
        %793 = vmatpush.msra.mxu0 %v681
        %794 = vmatmul.f32.gmra.mxu0 %v673
        %v795 = vpop.f32.mrf.mxu0
        %v796 = vadd.f32 0.0, %v795
        %797 = vmatmul.f32.gmra.mxu0 %v674
        %v798 = vpop.f32.mrf.mxu0
        %v799 = vadd.f32 0.0, %v798
        %800 = vmatmul.f32.gmra.mxu0 %v675
        %v801 = vpop.f32.mrf.mxu0
        %v802 = vadd.f32 0.0, %v801
        %803 = vmatmul.f32.gmra.mxu0 %v676
        %v804 = vpop.f32.mrf.mxu0
        %v805 = vadd.f32 0.0, %v804
        %806 = vmatmul.f32.gmra.mxu0 %v677
        %v807 = vpop.f32.mrf.mxu0
        %v808 = vadd.f32 0.0, %v807
        %809 = vmatmul.f32.gmra.mxu0 %v678
        %v810 = vpop.f32.mrf.mxu0
        %v811 = vadd.f32 0.0, %v810
        %812 = vmatmul.f32.gmra.mxu0 %v679
        %v813 = vpop.f32.mrf.mxu0
        %v814 = vadd.f32 0.0, %v813
        %815 = vmatmul.f32.gmra.mxu0 %v680
        %v816 = vpop.f32.mrf.mxu0
        %v817 = vadd.f32 0.0, %v816
        %818 = vdwg.mxu0
        %819 = vst [vmem:[%s429 + $0x80] sm:$0xff] %v796
        %820 = vst [vmem:[%s429 + $0x88] sm:$0xff] %v799
        %821 = vst [vmem:[%s429 + $0x90] sm:$0xff] %v802
        %822 = vst [vmem:[%s429 + $0x98] sm:$0xff] %v805
        %823 = vst [vmem:[%s429 + $0xa0] sm:$0xff] %v808
        %824 = vst [vmem:[%s429 + $0xa8] sm:$0xff] %v811
        %825 = vst [vmem:[%s429 + $0xb0] sm:$0xff] %v814
        %826 = vst [vmem:[%s429 + $0xb8] sm:$0xff] %v817
        %v827 = vld [vmem:[%s349] sm:$0xf]
        %v828 = vld [vmem:[%s349 + $0x4] sm:$0xf]
        %v829 = vmul.f32 %v827, %v828
        %vm830 = vcmask 60416
        %v831 = vsel %vm830, %v829, 0.0
        %832 = vadd.xlane.f32.xlu0 %v831
        %v833 = vpop.xlane.xlu0 %832
        %v834 = vrot.slane %v833, 4
        %v835 = vadd.f32 %v833, %v834
        %v836 = vrot.slane %v835, 2
        %v837 = vadd.f32 %v835, %v836
        %v838 = vrot.slane %v837, 1
        %v839 = vadd.f32 %v837, %v838
        %s840 = vtos %v839
        %s841 = ssub.f32 0.0, %s840
        %v842 = vrcp.pop 32.0
        %v843 = vmul.f32 32.0, %v842
        %v844 = vsub.f32 1.0, %v843
        %v845 = vmul.f32 %v842, %v844
        %v846 = vadd.f32 %v842, %v845
        %vm847 = vweird.f32 %v842
        %v848 = vsel %vm847, %v842, %v846
        %s849 = vtos %v848
        %s850 = smul.f32 %s841, %s849
        %vm851 = vcmp.ne.s32.totalorder %v435, 0
        %v852 = vld [vmem:[%s339] sm:$0xff]
        %vm853 = vcmp.eq.s32.totalorder %v852, %v435
        %vm854 = vmand %vm853, %vm851
        %v855 = vsel %vm854, 1, 0
        %v856 = vcvt.s32.f32 %v855
        %vm857 = vcmask 64512
        %v858 = vsel %vm857, %v856, 0.0
        %859 = vadd.xlane.f32.xlu0 %v858
        %v860 = vpop.xlane.xlu0 %859
        %v861 = vrot.slane %v860, 4
        %v862 = vadd.f32 %v860, %v861
        %v863 = vrot.slane %v862, 2
        %v864 = vadd.f32 %v862, %v863
        %v865 = vrot.slane %v864, 1
        %v866 = vadd.f32 %v864, %v865
        %s867 = vtos %v866
        %v868 = vsel %vm851, 1, 0
        %v869 = vcvt.s32.f32 %v868
        %v870 = vsel %vm857, %v869, 0.0
        %871 = vadd.xlane.f32.xlu0 %v870
        %v872 = vpop.xlane.xlu0 %871
        %v873 = vrot.slane %v872, 4
        %v874 = vadd.f32 %v872, %v873
        %v875 = vrot.slane %v874, 2
        %v876 = vadd.f32 %v874, %v875
        %v877 = vrot.slane %v876, 1
        %v878 = vadd.f32 %v876, %v877
        %s879 = vtos %v878
        %s880 = smax.f32 %s879, 1.0
        %v881 = vstv %s880
        %v882 = vrcp.pop %v881
        %v883 = vmul.f32 %v881, %v882
        %v884 = vsub.f32 1.0, %v883
        %v885 = vmul.f32 %v882, %v884
        %v886 = vadd.f32 %v882, %v885
        %vm887 = vweird.f32 %v881
        %vm888 = vweird.f32 %v882
        %vm889 = vmor %vm887, %vm888
        %v890 = vsel %vm889, %v882, %v886
        %v891 = vand.u32 2147483647, %v881
        %vm892 = vcmp.eq.f32.partialorder %v891, 8.507059e+37
        %v893 = vand.u32 %v881, 2147483648
        %v894 = vor.u32 1.1754944e-38, %v893
        %v895 = vsel %vm892, %v894, %v890
        %s896 = vtos %v895
        %s897 = smul.f32 %s867, %s896
        %vm898 = vcmp.eq.s32.totalorder %v448, 0
        %v899 = vstv %s850
        %v900 = vsel %vm898, %v899, 0.0
        %vm901 = vcmp.eq.s32.totalorder %v448, 1
        %v902 = vstv %s897
        %v903 = vsel %vm901, %v902, 0.0
        %v904 = vadd.f32 %v900, %v903
        %905 = vst [vmem:[%s433] sm:$0xff] %v904
        %p906 = scmp.lt.s32.totalorder %s34, 1
        %s907 = scalar_select %p906, %s34, 1
        %s908 = smul.addr %s907, 8
        %s909 = scalar_lea.vmem %s6, %s908
        %p910 = scmp.lt.s32.totalorder %s34, 1
        %s911 = scalar_select %p910, %s34, 1
        %s912 = smul.addr %s911, 24
        %s913 = smul.addr %s912, 8
        %s914 = scalar_lea.vmem %s7, %s913
        %p915 = scmp.lt.s32.totalorder %s34, 1
        %s916 = scalar_select %p915, %s34, 1
        %s917 = smul.addr %s916, 8
        %s918 = scalar_lea.vmem %s8, %s917
        // Predicated region
        $region53: #{trainer_step.1} parent=39 // pred_check
          %p919 = pneg %p181
        $region54: #{trainer_step.1} parent=39 // pred_check_branch
          %921 = sbr.rel (%p919) target = $region56
        $region55: #{trainer_step.1} parent=39 // pred_region
          _
        $region56: #{trainer_step.1} parent=39 // pred_fallthru
          _
        // Predicated region
        $region57: #{trainer_step.1} parent=39 // pred_check
          %p922 = pneg %p207
        $region58: #{trainer_step.1} parent=39 // pred_check_branch
          %924 = sbr.rel (%p922) target = $region60
        $region59: #{trainer_step.1} parent=39 // pred_region
          _
        $region60: #{trainer_step.1} parent=39 // pred_fallthru
          _
        // Predicated region
        $region61: #{trainer_step.1} parent=39 // pred_check
          %p925 = pneg %p233
        $region62: #{trainer_step.1} parent=39 // pred_check_branch
          %927 = sbr.rel (%p925) target = $region64
        $region63: #{trainer_step.1} parent=39 // pred_region
          _
        $region64: #{trainer_step.1} parent=39 // pred_fallthru
          _
      $region40: #{trainer_step.1} parent=5 // pred_fallthru
        _
      %p928 = scmp.le.s32.totalorder 2, %s29
      // Predicated region
      $region65: #{trainer_step.1} parent=5 // pred_check
        %p929 = pneg %p928
      $region66: #{trainer_step.1} parent=5 // pred_check_branch
        %931 = sbr.rel (%p929) target = $region68
      $region67: #{trainer_step.1} parent=5 // pred_region
        %s932 = ssub.s32 %s29, 2
        // Predicated region
        $region69: #{trainer_step.1} parent=67 // pred_check
          %p933 = pneg %p187
        $region70: #{trainer_step.1} parent=67 // pred_check_branch
          %935 = sbr.rel (%p933) target = $region72
        $region71: #{trainer_step.1} parent=67 // pred_region
          %p936 = scmp.lt.s32.totalorder %s35, 1
          %s937 = scalar_select %p936, %s35, 1
          %s938 = smul.addr %s937, 8
          %s939 = scalar_lea.vmem %s6, %s938
        $region72: #{trainer_step.1} parent=67 // pred_fallthru
          _
        // Predicated region
        $region73: #{trainer_step.1} parent=67 // pred_check
          %p940 = pneg %p213
        $region74: #{trainer_step.1} parent=67 // pred_check_branch
          %942 = sbr.rel (%p940) target = $region76
        $region75: #{trainer_step.1} parent=67 // pred_region
          %p943 = scmp.lt.s32.totalorder %s35, 1
          %s944 = scalar_select %p943, %s35, 1
          %s945 = smul.addr %s944, 24
          %s946 = smul.addr %s945, 8
          %s947 = scalar_lea.vmem %s7, %s946
        $region76: #{trainer_step.1} parent=67 // pred_fallthru
          _
        // Predicated region
        $region77: #{trainer_step.1} parent=67 // pred_check
          %p948 = pneg %p239
        $region78: #{trainer_step.1} parent=67 // pred_check_branch
          %950 = sbr.rel (%p948) target = $region80
        $region79: #{trainer_step.1} parent=67 // pred_region
          %p951 = scmp.lt.s32.totalorder %s35, 1
          %s952 = scalar_select %p951, %s35, 1
          %s953 = smul.addr %s952, 8
          %s954 = scalar_lea.vmem %s8, %s953
        $region80: #{trainer_step.1} parent=67 // pred_fallthru
          _
      $region68: #{trainer_step.1} parent=5 // pred_fallthru
        _
    $region6: #{trainer_step.1} parent=1 // loop_footer
      %s33 = sadd.s32 1, %s29
    $region7: #{trainer_step.1} parent=1 // loop_footer_branch
      %28 = sbr.rel target = $region3
    $region8: #{trainer_step.1} parent=1 // loop_exit
      _
    %955 = vsyncpa [#allocation5], 1
    %s956 = scalar_lea.sflag [#allocation5], 1
    %957 = vsyncpa %s956, 1
    %958 = vsyncpa [#allocation7], 1
    %s959 = scalar_lea.sflag [#allocation7], 1
    %960 = vsyncpa %s959, 1

</llo_original>
